<compile_context>
chip_gen: v5e
topology: v5e:2x2
jax: 0.10.0
libtpu: 0.0.40
codegen_flags: <defaults>
</compile_context>

<pallas_src>
import math

import jax
import jax.numpy as jnp
from jax.experimental import pallas as pl
from jax.experimental.pallas import tpu as pltpu

_LANES = 128
_SUBLANES = 8
_TARGET_BLOCK_BYTES = 2 * 1024 * 1024  # ~2 MiB blocks -> ~8 MiB pipelined VMEM


def _drop_path_kernel(scale_ref, x_ref, o_ref):
    """One (TB, TS, 128) tile times the per-row scale (TB, 1, 1)."""
    o_ref[...] = x_ref[...] * scale_ref[...]


def _drop_path_main(x3d, scale3d):
    """Tiled multiply on a lane-dense (B, S, 128) view of the activation."""
    B, S, _ = x3d.shape
    itemsize = jnp.dtype(x3d.dtype).itemsize

    # Feature-axis tile: multiple of 8 sublanes (or full S), targeting ~2 MiB.
    target_sublanes = max(
        _SUBLANES,
        (_TARGET_BLOCK_BYTES // (_LANES * itemsize)) // _SUBLANES * _SUBLANES,
    )
    TS = S if S <= target_sublanes else target_sublanes

    # Batch-axis tile: grow the block across rows when a single row is small.
    row_bytes = TS * _LANES * itemsize
    TB = max(1, min(B, _TARGET_BLOCK_BYTES // row_bytes))

    grid = (pl.cdiv(B, TB), pl.cdiv(S, TS))

    return pl.pallas_call(
        _drop_path_kernel,
        out_shape=jax.ShapeDtypeStruct((B, S, _LANES), x3d.dtype),
        grid_spec=pltpu.PrefetchScalarGridSpec(
            num_scalar_prefetch=0,
            grid=grid,
            in_specs=[
                pl.BlockSpec((TB, 1, 1), lambda bi, ti: (bi, 0, 0)),
                pl.BlockSpec((TB, TS, _LANES), lambda bi, ti: (bi, ti, 0)),
            ],
            out_specs=pl.BlockSpec((TB, TS, _LANES), lambda bi, ti: (bi, ti, 0)),
        ),
        compiler_params=pltpu.CompilerParams(
            dimension_semantics=("parallel", "parallel"),
        ),
    )(scale3d, x3d)


def drop_path_pallas(x, p, *, key=None, seed=0, training=True, mode="row"):
    """Pallas equivalent of drop_path(input, p, training, mode)."""
    if not training or p == 0.0:
        return x
    if mode not in ("row", "batch"):
        raise NotImplementedError(f"Drop path mode not implemented: {mode}")

    survival = 1.0 - p
    inv_survival = (1.0 / survival) if survival > 0.0 else 0.0

    B = x.shape[0]
    D = int(math.prod(x.shape[1:]))

    # Per-row keep decisions: O(B) work, generated with jax.random outside the
    # kernel (no in-kernel PRNG needed for stochastic depth).
    if key is None:
        key = jax.random.PRNGKey(seed)
    if mode == "row":
        keep = jax.random.bernoulli(key, survival, (B,))
    else:  # batch: one shared decision for every row
        keep = jnp.broadcast_to(jax.random.bernoulli(key, survival, (1,)), (B,))
    scale = jnp.where(keep, inv_survival, 0.0).astype(x.dtype)  # (B,)

    x2d = x.reshape(B, D)
    D_main = (D // _LANES) * _LANES
    tail = D - D_main

    parts = []
    if D_main > 0:
        S = D_main // _LANES
        x3d = x2d[:, :D_main].reshape(B, S, _LANES)  # free reshape when tail == 0
        y3d = _drop_path_main(x3d, scale.reshape(B, 1, 1))
        parts.append(y3d.reshape(B, D_main))
    if tail > 0:
        # < 128 trailing columns per row: cheaper as a plain fused multiply
        # than padding the whole activation to a 128 multiple and slicing back.
        parts.append(x2d[:, D_main:] * scale.reshape(B, 1))

    out = parts[0] if len(parts) == 1 else jnp.concatenate(parts, axis=1)
    return out.reshape(x.shape)
    # TODO(synk): optional extra win — skip the input DMA for dropped rows via a
    # keep-dependent index_map + pl.when (saves ~p*50% of HBM read traffic).


class DropPath:
    """Thin wrapper mirroring the PyTorch module (no learnable params)."""

    def __init__(self, p: float, mode: str = "row"):
        self.p = p
        self.mode = mode
        self.training = True

    def __call__(self, x, *, key=None, seed=0):
        return drop_path_pallas(
            x, self.p, key=key, seed=seed, training=self.training, mode=self.mode
        )


if __name__ == "__main__":
    ok = True

    # NCHW activation, D = 4*16*16 = 1024 (multiple of 128 -> pure kernel path).
    x = jax.random.normal(jax.random.PRNGKey(0), (2, 4, 16, 16), dtype=jnp.float32)
    surv = 1.0 - 0.3

    # ROW mode: each batch row must be either exactly 0 or x / (1 - p).
    module = DropPath(p=0.3, mode="row")
    y_row = jax.block_until_ready(module(x, seed=123))
    for b in range(x.shape[0]):
        row = y_row[b]
        is_zero = bool(jnp.all(row == 0.0))
        is_scaled = bool(jnp.allclose(row, x[b] / surv, rtol=1e-5, atol=1e-5))
        ok &= (is_zero or is_scaled)

    # BATCH mode: same decision for every row.
    y_batch = jax.block_until_ready(
        drop_path_pallas(x, 0.3, seed=7, training=True, mode="batch"))
    zero_flags = [bool(jnp.all(y_batch[b] == 0.0)) for b in range(x.shape[0])]
    ok &= (all(zero_flags) or not any(zero_flags))
    if not all(zero_flags):
        ok &= bool(jnp.allclose(y_batch, x / surv, rtol=1e-5, atol=1e-5))

    # Feature size not a multiple of 128 (kernel on first 640 cols + wrapper tail).
    x2 = jax.random.normal(jax.random.PRNGKey(1), (4, 675), dtype=jnp.float32)
    y2 = jax.block_until_ready(
        drop_path_pallas(x2, 0.5, seed=3, training=True, mode="row"))
    for b in range(x2.shape[0]):
        row = y2[b]
        is_zero = bool(jnp.all(row == 0.0))
        is_scaled = bool(jnp.allclose(row, x2[b] / 0.5, rtol=1e-5, atol=1e-5))
        ok &= (is_zero or is_scaled)

    # Tiny feature size (< 128): wrapper-only path.
    x3 = jax.random.normal(jax.random.PRNGKey(2), (3, 5, 7), dtype=jnp.float32)
    y3 = jax.block_until_ready(
        drop_path_pallas(x3, 0.5, seed=11, training=True, mode="row"))
    for b in range(x3.shape[0]):
        row = y3[b]
        is_zero = bool(jnp.all(row == 0.0))
        is_scaled = bool(jnp.allclose(row, x3[b] / 0.5, rtol=1e-5, atol=1e-5))
        ok &= (is_zero or is_scaled)

    # bf16 input (dtype-aware tiling; loose tolerance for bf16 rounding).
    xb = jax.random.normal(jax.random.PRNGKey(3), (2, 8, 256), dtype=jnp.bfloat16)
    yb = jax.block_until_ready(
        drop_path_pallas(xb, 0.25, seed=5, training=True, mode="row"))
    for b in range(xb.shape[0]):
        row = yb[b].astype(jnp.float32)
        ref = xb[b].astype(jnp.float32) / 0.75
        is_zero = bool(jnp.all(row == 0.0))
        is_scaled = bool(jnp.allclose(row, ref, rtol=2e-2, atol=1e-2))
        ok &= (is_zero or is_scaled)

    # Eval mode / p == 0 are identity pass-throughs.
    module.training = False
    y_eval = jax.block_until_ready(module(x))
    ok &= bool(jnp.array_equal(y_eval, x))
    ok &= bool(jnp.array_equal(
        jax.block_until_ready(drop_path_pallas(x, 0.0, training=True)), x))

    print("KERNEL_OK" if ok else "KERNEL_MISMATCH")
</pallas_src>

<mosaic_0001>
module attributes {stable_mosaic.version = 11 : i64} {
  func.func @_drop_path_kernel(%arg0: i32, %arg1: i32, %arg2: memref<2x1x1xf32, #tpu.memory_space<vmem>>, %arg3: memref<2x8x128xf32, #tpu.memory_space<vmem>>, %arg4: memref<2x8x128xf32, #tpu.memory_space<vmem>>) attributes {dimension_semantics = [#tpu.dimension_semantics<parallel>, #tpu.dimension_semantics<parallel>], iteration_bounds = array<i64: 1, 1>, scalar_prefetch = 0 : i64, scratch_operands = 0 : i64, tpu.core_type = #tpu.core_type<tc>, window_params = [{transform_indices = @transform_0, window_bounds = array<i64: 2, 1, 1>}, {transform_indices = @transform_1, window_bounds = array<i64: 2, 8, 128>}, {transform_indices = @transform_2, window_bounds = array<i64: 2, 8, 128>}]} {
    %c0 = arith.constant 0 : index
    %c0_0 = arith.constant 0 : index
    %c0_1 = arith.constant 0 : index
    %0 = vector.load %arg3[%c0, %c0_0, %c0_1] : memref<2x8x128xf32, #tpu.memory_space<vmem>>, vector<2x8x128xf32>
    %c0_2 = arith.constant 0 : index
    %c0_3 = arith.constant 0 : index
    %c0_4 = arith.constant 0 : index
    %1 = vector.load %arg2[%c0_2, %c0_3, %c0_4] : memref<2x1x1xf32, #tpu.memory_space<vmem>>, vector<2x1x1xf32>
    %2 = vector.broadcast %1 : vector<2x1x1xf32> to vector<2x8x128xf32>
    %3 = arith.mulf %0, %2 : vector<2x8x128xf32>
    %c0_5 = arith.constant 0 : index
    %c0_6 = arith.constant 0 : index
    %c0_7 = arith.constant 0 : index
    %4 = vector.load %arg4[%c0_5, %c0_6, %c0_7] : memref<2x8x128xf32, #tpu.memory_space<vmem>>, vector<2x8x128xf32>
    tpu.vector_store %arg4[%c0_5, %c0_6, %c0_7], %3 {strides = array<i32>} : memref<2x8x128xf32, #tpu.memory_space<vmem>>, vector<2x8x128xf32>,
    return
  }
  func.func @transform_0(%arg0: i32, %arg1: i32) -> (i32, i32, i32) {
    %c0_i32 = arith.constant 0 : i32
    %c0_i32_0 = arith.constant 0 : i32
    %c0_i32_1 = arith.constant 0 : i32
    return %arg0, %c0_i32, %c0_i32_0 : i32, i32, i32
  }
  func.func @transform_1(%arg0: i32, %arg1: i32) -> (i32, i32, i32) {
    %c0_i32 = arith.constant 0 : i32
    %c0_i32_0 = arith.constant 0 : i32
    return %arg0, %arg1, %c0_i32 : i32, i32, i32
  }
  func.func @transform_2(%arg0: i32, %arg1: i32) -> (i32, i32, i32) {
    %c0_i32 = arith.constant 0 : i32
    %c0_i32_0 = arith.constant 0 : i32
    return %arg0, %arg1, %c0_i32 : i32, i32, i32
  }
}

</mosaic_0001>

<llo_original>
// kernel: tpu_custom_call.1
$region0: #{tpu_custom_call.1}
  #allocation0 [shape = 'u32[]', space=smem, size = 0x4, offset = 0x4, fixed_abs, tag = 'smem constant byte address 0x4 - core index']
  #allocation1 [shape = 'u32[72,128]{1,0:T(1,128)}', space=vmem, size = 0x9000, scoped, tag = 'internal scratch']
  %s0 = inlined_call_operand.vmem [shape: f32[2,1,1], index: 0, kind: input, shape index: {}]
  %s1 = inlined_call_operand.hbm [shape: f32[2,8,128], index: 1, kind: input, shape index: {}]
  %s2 = inlined_call_operand.hbm [shape: f32[2,8,128], index: 2, kind: output, shape index: {}]
  %s3 = sld [smem:[#allocation0]]
  $region22: #{tpu_custom_call.1} parent=0
    _
  %s5 = ssub.s32 1, %s3
  %s6 = scalar_select 0, %s5, %s3
  $region1: #{tpu_custom_call.1} parent=0
    #allocation2 [shape = 'u8[8192]{0}', space=vmem, size = 0x2000, scoped, tag = 'input window, operand 1, single buffered']
    #allocation3 [shape = 's32[1]{0}', space=sflag, size = 0x4, scoped, tag = 'scoped memory for tpu_custom_call.1']
    #allocation4 [shape = 's32[1]{0}', space=sflag, size = 0x4, scoped, tag = 'scoped memory for tpu_custom_call.1']
    #allocation5 [shape = 'u8[8192]{0}', space=vmem, size = 0x2000, scoped, tag = 'output window, operand 0, single buffered']
    %7 = vsyncpa [#allocation3], 0
    %8 = vsyncpa [#allocation4], 0
    // Predicated region
    $region2: #{tpu_custom_call.1} parent=1 // pred_check
      _
    $region3: #{tpu_custom_call.1} parent=1 // pred_check_branch
      %10 = sbr.rel (0) target = $region5
    $region4: #{tpu_custom_call.1} parent=1 // pred_region
      _
    $region5: #{tpu_custom_call.1} parent=1 // pred_fallthru
      _
    // Predicated region
    $region6: #{tpu_custom_call.1} parent=1 // pred_check
      _
    $region7: #{tpu_custom_call.1} parent=1 // pred_check_branch
      %12 = sbr.rel (0) target = $region9
    $region8: #{tpu_custom_call.1} parent=1 // pred_region
      %14 = vsyncadd [#allocation3], 0
      %s15 = sshll.u32 %s1, 4
      %s16 = int_to_ptr.hbm [resolvable:$true] %s15
      %s17 = sshll.u32 [#allocation2], 4
      %s18 = int_to_ptr.vmem [resolvable:$true] %s17
      %23 = dma.hbm_to_vmem [thread:$0]  %s16, 256, %s18, [#allocation3], 128, 128, 8
    $region9: #{tpu_custom_call.1} parent=1 // pred_fallthru
      _
    // Predicated region
    $region10: #{tpu_custom_call.1} parent=1 // pred_check
      _
    $region11: #{tpu_custom_call.1} parent=1 // pred_check_branch
      %25 = sbr.rel (0) target = $region13
    $region12: #{tpu_custom_call.1} parent=1 // pred_region
      %27 = dma.done [#allocation3], 256
    $region13: #{tpu_custom_call.1} parent=1 // pred_fallthru
      _
    %v28 = vld [vmem:[#allocation2] sm:$0xff]
    %v29 = vld [vmem:[#allocation2 + $0x8] sm:$0xff]
    %v30 = vld [vmem:[%s0] sm:$0x1]
    %v31 = vld [vmem:[%s0 + $0x1] sm:$0x1]
    %v34 = vperm.slane %v30, 0
    %v35 = vperm.slane %v31, 0
    %36 = vset.pattern.permute.xlu0 0
    %37 = vperm.xlu0 %36, %v34
    %v38 = vpop.permute.xlu0 %37
    %40 = vset.pattern.permute.xlu0 0
    %41 = vperm.xlu0 %40, %v35
    %v42 = vpop.permute.xlu0 %41
    %v44 = vmul.f32 %v28, %v38
    %v45 = vmul.f32 %v29, %v42
    %46 = vst [vmem:[#allocation5] sm:$0xff] %v44
    %47 = vst [vmem:[#allocation5 + $0x8] sm:$0xff] %v45
    // Predicated region
    $region14: #{tpu_custom_call.1} parent=1 // pred_check
      _
    $region15: #{tpu_custom_call.1} parent=1 // pred_check_branch
      %49 = sbr.rel (0) target = $region17
    $region16: #{tpu_custom_call.1} parent=1 // pred_region
      %51 = vsyncadd [#allocation4], 0
      %s52 = sshll.u32 [#allocation5], 4
      %s53 = int_to_ptr.vmem [resolvable:$true] %s52
      %s54 = sshll.u32 %s2, 4
      %s55 = int_to_ptr.hbm [resolvable:$true] %s54
      %60 = dma.vmem_to_hbm [thread:$0]  %s53, 256, %s55, [#allocation4], 128, 128, 8
    $region17: #{tpu_custom_call.1} parent=1 // pred_fallthru
      _
    // Predicated region
    $region18: #{tpu_custom_call.1} parent=1 // pred_check
      _
    $region19: #{tpu_custom_call.1} parent=1 // pred_check_branch
      %62 = sbr.rel (0) target = $region21
    $region20: #{tpu_custom_call.1} parent=1 // pred_region
      %64 = dma.done [#allocation4], 256
    $region21: #{tpu_custom_call.1} parent=1 // pred_fallthru
      _
    %65 = vsyncpa [#allocation3], 1
    %66 = vsyncpa [#allocation4], 1

</llo_original>
